<compile_context>
chip_gen: v7x
topology: tpu7x:2x2x1
jax: 0.10.0
libtpu: 0.0.40
codegen_flags: <defaults>
</compile_context>

<pallas_src>
import functools

import jax
import jax.numpy as jnp
from jax.experimental import pallas as pl
from jax.experimental.pallas import tpu as pltpu

NEG_BIG = -1e30  # finite "-inf": exp(NEG_BIG - finite) underflows to exactly 0


# ---------------------------------------------------------------------------
# Kernel 1: node projection + fused attention logits
#   hw   = h @ W                (bf16 x bf16 -> f32 MXU, stored bf16)
#   e_lr = hw @ [a_l | a_r]     (single fused [F_out, 2] matmul, f32)
# ---------------------------------------------------------------------------
def gat_proj_kernel(h_ref, w_ref, alr_ref, hw_ref, e_ref):
    hw = jnp.dot(h_ref[...], w_ref[...], preferred_element_type=jnp.float32)
    e_ref[...] = jnp.dot(hw, alr_ref[...], preferred_element_type=jnp.float32)
    hw_ref[...] = hw.astype(hw_ref.dtype)   # bf16: halves the hw HBM stream


# ---------------------------------------------------------------------------
# Kernel 2: dst-major masked edge-softmax + aggregation (online softmax)
#   grid = (dst tiles ["parallel"], src tiles ["arbitrary"])
#   s[v, u] = leaky_relu(e_r[v] + e_l[u]);  alpha = softmax over u (lanes)
#   out[v]  = sum_u alpha[v, u] * hw[u]  ==  alpha @ hw
# ---------------------------------------------------------------------------
def gat_attn_kernel(er_ref, el_ref, adj_ref, hw_ref, out_ref,
                    m_sc, l_sc, acc_sc, *, tile_src, hw_resident):
    j = pl.program_id(1)

    @pl.when(j == 0)
    def _init():
        m_sc[...] = jnp.full(m_sc.shape, NEG_BIG, jnp.float32)
        l_sc[...] = jnp.zeros(l_sc.shape, jnp.float32)
        acc_sc[...] = jnp.zeros(acc_sc.shape, jnp.float32)

    if hw_resident:
        # hw lives fully in VMEM (constant index map); slice this src tile.
        src0 = pl.multiple_of(j * tile_src, tile_src)
        hw_tile = hw_ref[pl.ds(src0, tile_src), :]
    else:
        hw_tile = hw_ref[...]

    # scores for this (dst tile, src tile): [TD, 1] + [1, TS] -> [TD, TS]
    s = er_ref[...] + el_ref[...]
    s = jnp.maximum(s, 0.2 * s)                  # leaky_relu, slope 0.2 (in (0,1))
    s = jnp.where(adj_ref[...] > 0, s, NEG_BIG)  # int8 adjacency mask

    # online softmax along lanes (src axis)
    m_prev = m_sc[...]
    m_new = jnp.maximum(m_prev, jnp.max(s, axis=-1, keepdims=True))
    # Rows with no edge seen so far keep m == NEG_BIG; subtract 0 there so the
    # masked entries underflow to exactly 0 (instead of exp(0)=1).  This is
    # the cheap [TD,1] isolated-row guard that replaces the old full-tile
    # jnp.where(mask, exp, 0) select.
    safe_m = jnp.where(m_new > 0.5 * NEG_BIG, m_new, 0.0)
    corr = jnp.exp(m_prev - m_new)               # 1 if both NEG_BIG, 0/real else
    p = jnp.exp(s - safe_m)                      # masked entries -> exactly 0
    l_sc[...] = corr * l_sc[...] + jnp.sum(p, axis=-1, keepdims=True)
    acc_sc[...] = corr * acc_sc[...] + jnp.dot(
        p.astype(hw_tile.dtype), hw_tile,        # bf16 x bf16 -> f32 MXU
        preferred_element_type=jnp.float32)
    m_sc[...] = m_new

    @pl.when(j == pl.num_programs(1) - 1)
    def _finalize():
        denom = l_sc[...]
        inv = pl.reciprocal(jnp.where(denom > 0, denom, 1.0), approx=True)
        out_ref[...] = (acc_sc[...] * inv).astype(out_ref.dtype)


# ---------------------------------------------------------------------------
# Wrapper
# ---------------------------------------------------------------------------
def gat_forward(h, w, a_l, a_r, adj, *,
                tile_n=512, tile_dst=512, tile_src=512,
                hw_resident_budget_bytes=12 << 20):
    """h:[N,F_in], w:[F_in,F_out] (=fc.weight.T), a_l/a_r:[F_out,1],
    adj:[N,N] with adj[u,v]=1 iff edge u->v. Returns [N, F_out].

    Note: keep N // tile_dst >= 2 on v7x so the "parallel" dst axis spans
    both TensorCores (same for the kernel-1 node-row grid).
    """
    N, F_in = h.shape
    F_out = w.shape[1]
    tile_n = min(tile_n, N)
    tile_dst = min(tile_dst, N)
    tile_src = min(tile_src, N)
    assert N % tile_n == 0 and N % tile_dst == 0 and N % tile_src == 0

    a_lr = jnp.concatenate([a_l, a_r], axis=-1).astype(jnp.float32)  # [F_out, 2]

    # ---- kernel 1: bf16 projection + fused logits, tiled over node rows ----
    hw, e_lr = pl.pallas_call(
        gat_proj_kernel,
        out_shape=(jax.ShapeDtypeStruct((N, F_out), jnp.bfloat16),
                   jax.ShapeDtypeStruct((N, 2), jnp.float32)),
        grid=(N // tile_n,),
        in_specs=[
            pl.BlockSpec((tile_n, F_in), lambda i: (i, 0)),
            pl.BlockSpec((F_in, F_out), lambda i: (0, 0)),   # W resident
            pl.BlockSpec((F_out, 2), lambda i: (0, 0)),
        ],
        out_specs=(
            pl.BlockSpec((tile_n, F_out), lambda i: (i, 0)),
            pl.BlockSpec((tile_n, 2), lambda i: (i, 0)),
        ),
        compiler_params=pltpu.CompilerParams(
            dimension_semantics=("parallel",),
            vmem_limit_bytes=48 << 20),
    )(h.astype(jnp.bfloat16), w.astype(jnp.bfloat16), a_lr)

    # src logits as a lane-dense row, dst logits as a column (tiny N-sized ops)
    e_l_row = e_lr[:, 0].reshape(1, N)
    e_r_col = e_lr[:, 1:2]
    # cast to int8 BEFORE the transpose: 4x fewer bytes moved by XLA, and the
    # kernel streams a dst-major int8 adjacency (the dominant HBM stream).
    adj_t = jnp.asarray(adj, jnp.int8).T

    # hw residency: full [N, F_out] bf16 kept in VMEM across the whole grid if
    # it fits a conservative double-buffered budget (sized for v7x's 64 MiB
    # VMEM); otherwise stream one src tile per step as before.
    hw_resident = 2 * (N * F_out * 2) <= hw_resident_budget_bytes
    if hw_resident:
        hw_spec = pl.BlockSpec((N, F_out), lambda i, j: (0, 0))
    else:
        hw_spec = pl.BlockSpec((tile_src, F_out), lambda i, j: (j, 0))

    kernel = functools.partial(gat_attn_kernel,
                               tile_src=tile_src, hw_resident=hw_resident)

    # ---- kernel 2: tiled masked softmax + aggregation ----
    out = pl.pallas_call(
        kernel,
        out_shape=jax.ShapeDtypeStruct((N, F_out), jnp.float32),
        grid=(N // tile_dst, N // tile_src),
        in_specs=[
            pl.BlockSpec((tile_dst, 1), lambda i, j: (i, 0)),
            pl.BlockSpec((1, tile_src), lambda i, j: (0, j)),
            pl.BlockSpec((tile_dst, tile_src), lambda i, j: (i, j)),
            hw_spec,
        ],
        out_specs=pl.BlockSpec((tile_dst, F_out), lambda i, j: (i, 0)),
        scratch_shapes=[
            pltpu.VMEM((tile_dst, 1), jnp.float32),      # running max m
            pltpu.VMEM((tile_dst, 1), jnp.float32),      # running denom l
            pltpu.VMEM((tile_dst, F_out), jnp.float32),  # accumulator
        ],
        compiler_params=pltpu.CompilerParams(
            dimension_semantics=("parallel", "arbitrary"),
            vmem_limit_bytes=48 << 20),  # headroom vs v7x's 64 MiB VMEM
    )(e_r_col, e_l_row, adj_t, hw)
    return out


# ---------------------------------------------------------------------------
# Pure-JAX reference (mirrors the DGL semantics, full f32)
# ---------------------------------------------------------------------------
def gat_reference(h, w, a_l, a_r, adj):
    hw = h @ w
    e_l = hw @ a_l                     # [N, 1]
    e_r = hw @ a_r                     # [N, 1]
    s = e_l + e_r.T                    # s[u, v] = e_l[u] + e_r[v]
    s = jnp.where(s > 0, s, 0.2 * s)
    s_m = jnp.where(adj > 0, s, NEG_BIG)
    m = jnp.max(s_m, axis=0, keepdims=True)
    p = jnp.exp(s_m - m) * adj
    denom = jnp.sum(p, axis=0, keepdims=True)
    alpha = p / jnp.where(denom > 0, denom, 1.0)
    return alpha.T @ hw


if __name__ == "__main__":
    key = jax.random.PRNGKey(0)
    k_h, k_w, k_al, k_ar, k_adj = jax.random.split(key, 5)

    N = 256          # number of nodes
    F_IN = 128       # in_feats
    F_OUT = 128      # out_feats (lane-dense: multiple of 128)

    h = jax.random.normal(k_h, (N, F_IN), dtype=jnp.float32)

    # GAT.__init__ parameter shapes, stored transposed for row-major matmul:
    #   fc.weight: (out, in) -> w = weight.T; fc_edge_*: (1, out) -> a_* = weight.T
    w = 0.1 * jax.random.normal(k_w, (F_IN, F_OUT), dtype=jnp.float32)
    a_l = 0.1 * jax.random.normal(k_al, (F_OUT, 1), dtype=jnp.float32)
    a_r = 0.1 * jax.random.normal(k_ar, (F_OUT, 1), dtype=jnp.float32)

    # deterministic graph: ring (i -> i+1) plus ~10% random extra edges
    src = jnp.arange(N)
    dst = (src + 1) % N
    adj = jnp.zeros((N, N), dtype=jnp.float32).at[src, dst].set(1.0)
    extra = (jax.random.uniform(k_adj, (N, N)) < 0.1).astype(jnp.float32)
    adj = jnp.clip(adj + extra, 0.0, 1.0)

    # small tiles here so the grid is 2x2: exercises online-softmax init /
    # accumulate / finalize and the resident-hw dynamic slicing (j = 0, 1).
    out = gat_forward(h, w, a_l, a_r, adj, tile_n=128, tile_dst=128, tile_src=128)
    out = jax.block_until_ready(out)

    ref = gat_reference(h, w, a_l, a_r, adj)
    assert out.shape == (N, F_OUT)
    max_err = float(jnp.max(jnp.abs(out - ref)))
    # bf16 projection / bf16 alpha & hw operands with f32 accumulation
    assert jnp.allclose(out, ref, atol=1e-1, rtol=1e-1), f"mismatch: max|err|={max_err}"

    print("KERNEL_OK")
</pallas_src>

<mosaic_0001>
module attributes {stable_mosaic.version = 11 : i64} {
  func.func @gat_proj_kernel(%arg0: i32, %arg1: memref<128x128xbf16, #tpu.memory_space<vmem>>, %arg2: memref<128x128xbf16, #tpu.memory_space<vmem>>, %arg3: memref<128x2xf32, #tpu.memory_space<vmem>>, %arg4: memref<128x128xbf16, #tpu.memory_space<vmem>>, %arg5: memref<128x2xf32, #tpu.memory_space<vmem>>) attributes {dimension_semantics = [#tpu.dimension_semantics<parallel>], iteration_bounds = array<i64: 2>, scalar_prefetch = 0 : i64, scratch_operands = 0 : i64, tpu.core_type = #tpu.core_type<tc>, window_params = [{transform_indices = @transform_0, window_bounds = array<i64: 128, 128>}, {pipeline_mode = #tpu.pipeline_mode<synchronous>, transform_indices = @transform_1, window_bounds = array<i64: 128, 128>}, {pipeline_mode = #tpu.pipeline_mode<synchronous>, transform_indices = @transform_2, window_bounds = array<i64: 128, 2>}, {transform_indices = @transform_3, window_bounds = array<i64: 128, 128>}, {transform_indices = @transform_4, window_bounds = array<i64: 128, 2>}]} {
    %c0 = arith.constant 0 : index
    %c0_0 = arith.constant 0 : index
    %0 = vector.load %arg1[%c0, %c0_0] : memref<128x128xbf16, #tpu.memory_space<vmem>>, vector<128x128xbf16>
    %c0_1 = arith.constant 0 : index
    %c0_2 = arith.constant 0 : index
    %1 = vector.load %arg2[%c0_1, %c0_2] : memref<128x128xbf16, #tpu.memory_space<vmem>>, vector<128x128xbf16>
    %cst = arith.constant dense<0.000000e+00> : vector<128x128xf32>
    %2 = tpu.matmul %0, %1, %cst {dimension_numbers = #tpu.dot_dimension_numbers<[1], [0], [0], [1], [0, 0, 1, 1], [], []>} : vector<128x128xbf16>, vector<128x128xbf16>, vector<128x128xf32> -> vector<128x128xf32>
    %c0_3 = arith.constant 0 : index
    %c0_4 = arith.constant 0 : index
    %3 = vector.load %arg3[%c0_3, %c0_4] : memref<128x2xf32, #tpu.memory_space<vmem>>, vector<128x2xf32>
    %cst_5 = arith.constant dense<0.000000e+00> : vector<128x2xf32>
    %4 = tpu.matmul %2, %3, %cst_5 {dimension_numbers = #tpu.dot_dimension_numbers<[1], [0], [0], [1], [0, 0, 1, 1], [], []>} : vector<128x128xf32>, vector<128x2xf32>, vector<128x2xf32> -> vector<128x2xf32>
    %c0_6 = arith.constant 0 : index
    %c0_7 = arith.constant 0 : index
    %5 = vector.load %arg5[%c0_6, %c0_7] : memref<128x2xf32, #tpu.memory_space<vmem>>, vector<128x2xf32>
    tpu.vector_store %arg5[%c0_6, %c0_7], %4 {strides = array<i32>} : memref<128x2xf32, #tpu.memory_space<vmem>>, vector<128x2xf32>,
    %6 = arith.truncf %2 : vector<128x128xf32> to vector<128x128xbf16>
    %c0_8 = arith.constant 0 : index
    %c0_9 = arith.constant 0 : index
    %7 = vector.load %arg4[%c0_8, %c0_9] : memref<128x128xbf16, #tpu.memory_space<vmem>>, vector<128x128xbf16>
    tpu.vector_store %arg4[%c0_8, %c0_9], %6 {strides = array<i32>} : memref<128x128xbf16, #tpu.memory_space<vmem>>, vector<128x128xbf16>,
    return
  }
  func.func @transform_0(%arg0: i32) -> (i32, i32) {
    %c0_i32 = arith.constant 0 : i32
    %c0_i32_0 = arith.constant 0 : i32
    return %arg0, %c0_i32 : i32, i32
  }
  func.func @transform_1(%arg0: i32) -> (i32, i32) {
    %c0_i32 = arith.constant 0 : i32
    %c0_i32_0 = arith.constant 0 : i32
    %c0_i32_1 = arith.constant 0 : i32
    return %c0_i32, %c0_i32_0 : i32, i32
  }
  func.func @transform_2(%arg0: i32) -> (i32, i32) {
    %c0_i32 = arith.constant 0 : i32
    %c0_i32_0 = arith.constant 0 : i32
    %c0_i32_1 = arith.constant 0 : i32
    return %c0_i32, %c0_i32_0 : i32, i32
  }
  func.func @transform_3(%arg0: i32) -> (i32, i32) {
    %c0_i32 = arith.constant 0 : i32
    %c0_i32_0 = arith.constant 0 : i32
    return %arg0, %c0_i32 : i32, i32
  }
  func.func @transform_4(%arg0: i32) -> (i32, i32) {
    %c0_i32 = arith.constant 0 : i32
    %c0_i32_0 = arith.constant 0 : i32
    return %arg0, %c0_i32 : i32, i32
  }
}

</mosaic_0001>

<llo_original>
// kernel: tpu_custom_call.1
$region0: #{tpu_custom_call.1}
  #allocation0 [shape = 'u32[]', space=smem, size = 0x4, offset = 0x4, fixed_abs, tag = 'smem constant byte address 0x4 - core index']
  #allocation1 [shape = 'u32[144,128]{1,0:T(1,128)}', space=vmem, size = 0x12000, scoped, tag = 'internal scratch']
  %s0 = inlined_call_operand.vmem [shape: bf16[256,128], index: 0, kind: input, shape index: {}]
  %s1 = inlined_call_operand.hbm [shape: bf16[128,128], index: 1, kind: input, shape index: {}]
  %s2 = inlined_call_operand.vmem [shape: f32[128,2], index: 2, kind: input, shape index: {}]
  %s3 = inlined_call_operand.hbm [shape: bf16[256,128], index: 3, kind: output, shape index: {0}]
  %s4 = inlined_call_operand.vmem [shape: f32[256,2], index: 4, kind: output, shape index: {1}]
  %5 = xla_tuple %s3, %s4
  %s6 = sld [smem:[#allocation0]]
  $region57: #{tpu_custom_call.1} parent=0
    _
  %s8 = ssub.s32 1, %s6
  %s9 = scalar_select 0, %s8, %s6
  $region1: #{tpu_custom_call.1} parent=0
    #allocation2 [shape = 'u8[32768]{0}', space=vmem, size = 0x8000, scoped, tag = 'input window, operand 1, single buffered']
    #allocation3 [shape = 's32[2]{0}', space=sflag, size = 0x8, scoped, tag = 'scoped memory for tpu_custom_call.1']
    #allocation4 [shape = 's32[2]{0}', space=sflag, size = 0x8, scoped, tag = 'scoped memory for tpu_custom_call.1']
    #allocation5 [shape = 'u8[65536]{0}', space=vmem, size = 0x10000, scoped, tag = 'output window, operand 0']
    %10 = vsyncpa [#allocation3], 0
    %11 = vsyncpa [#allocation4], 0
    %s12 = scalar_lea.sflag [#allocation4], 1
    %13 = vsyncpa %s12, 0
    loop: start=0, step=1, limit=4
    $region2: #{tpu_custom_call.1} parent=1 // loop_pre_header
      _
    $region3: #{tpu_custom_call.1} parent=1 // loop_header
      %s15 = sphi 0, %s19
      %p16 = scmp.ge.s32.totalorder %s15, 4
      %s25 = sphi 0, %s27
      %s28 = sphi 0, %s25
      %s29 = sphi 0, %s28
      %s45 = sphi 0, %s29
      %s49 = sphi 0, %s49
      %s51 = sphi 0, %s49
      %s52 = sphi 0, %s51
      %s66 = sphi 0, %s52
      %s70 = sphi 0, %s70
      %s72 = sphi 0, %s70
      %s73 = sphi 0, %s72
      %s87 = sphi 0, %s73
      %s93 = sphi 0, %s95
      %s96 = sphi 0, %s93
      %s97 = sphi 0, %s96
      %s113 = sphi 0, %s97
      %s119 = sphi 0, %s121
      %s122 = sphi 0, %s119
      %s123 = sphi 0, %s122
      %s139 = sphi 0, %s123
    $region4: #{tpu_custom_call.1} parent=1 // loop_header_branch
      %18 = sbr.rel (%p16) target = $region8
    $region5: #{tpu_custom_call.1} parent=1 // loop_body
      %s20 = ssub.s32 %s15, 1
      %s21 = ssub.s32 %s15, 2
      %s22 = sadd.s32 %s15, 1
      %s23 = ssub.s32 %s15, %s22
      %p24 = scmp.eq.s32.totalorder %s23, 0
      %s26 = sadd.s32 %s25, 1
      %s27 = scalar_select %p24, %s25, %s26
      %p30 = pneg %p24
      %p31 = scmp.eq.s32.totalorder %s15, 1
      %p32 = por %p30, %p31
      %p33 = scmp.ne.s32.totalorder %s25, %s28
      %p34 = scmp.eq.s32.totalorder %s15, 0
      %p35 = por %p33, %p34
      %p36 = scmp.ne.s32.totalorder %s25, %s28
      %p37 = scmp.eq.s32.totalorder %s20, 1
      %p38 = por %p36, %p37
      %p39 = scmp.ne.s32.totalorder %s28, %s29
      %p40 = scmp.eq.s32.totalorder %s20, 0
      %p41 = por %p39, %p40
      %p42 = scmp.ne.s32.totalorder %s28, %s29
      %p43 = scmp.eq.s32.totalorder %s21, 1
      %p44 = por %p42, %p43
      %p46 = scmp.ne.s32.totalorder %s29, %s45
      %p47 = scmp.eq.s32.totalorder %s21, 0
      %p48 = por %p46, %p47
      %s50 = sadd.s32 %s49, 1
      %p53 = scmp.eq.s32.totalorder %s15, 1
      %p54 = scmp.ne.s32.totalorder %s49, %s51
      %p55 = scmp.eq.s32.totalorder %s15, 0
      %p56 = por %p54, %p55
      %p57 = scmp.ne.s32.totalorder %s49, %s51
      %p58 = scmp.eq.s32.totalorder %s20, 1
      %p59 = por %p57, %p58
      %p60 = scmp.ne.s32.totalorder %s51, %s52
      %p61 = scmp.eq.s32.totalorder %s20, 0
      %p62 = por %p60, %p61
      %p63 = scmp.ne.s32.totalorder %s51, %s52
      %p64 = scmp.eq.s32.totalorder %s21, 1
      %p65 = por %p63, %p64
      %p67 = scmp.ne.s32.totalorder %s52, %s66
      %p68 = scmp.eq.s32.totalorder %s21, 0
      %p69 = por %p67, %p68
      %s71 = sadd.s32 %s70, 1
      %p74 = scmp.eq.s32.totalorder %s15, 1
      %p75 = scmp.ne.s32.totalorder %s70, %s72
      %p76 = scmp.eq.s32.totalorder %s15, 0
      %p77 = por %p75, %p76
      %p78 = scmp.ne.s32.totalorder %s70, %s72
      %p79 = scmp.eq.s32.totalorder %s20, 1
      %p80 = por %p78, %p79
      %p81 = scmp.ne.s32.totalorder %s72, %s73
      %p82 = scmp.eq.s32.totalorder %s20, 0
      %p83 = por %p81, %p82
      %p84 = scmp.ne.s32.totalorder %s72, %s73
      %p85 = scmp.eq.s32.totalorder %s21, 1
      %p86 = por %p84, %p85
      %p88 = scmp.ne.s32.totalorder %s73, %s87
      %p89 = scmp.eq.s32.totalorder %s21, 0
      %p90 = por %p88, %p89
      %s91 = ssub.s32 %s15, %s22
      %p92 = scmp.eq.s32.totalorder %s91, 0
      %s94 = sadd.s32 %s93, 1
      %s95 = scalar_select %p92, %s93, %s94
      %p98 = pneg %p92
      %p99 = scmp.eq.s32.totalorder %s15, 1
      %p100 = por %p98, %p99
      %p101 = scmp.ne.s32.totalorder %s93, %s96
      %p102 = scmp.eq.s32.totalorder %s15, 0
      %p103 = por %p101, %p102
      %p104 = scmp.ne.s32.totalorder %s93, %s96
      %p105 = scmp.eq.s32.totalorder %s20, 1
      %p106 = por %p104, %p105
      %p107 = scmp.ne.s32.totalorder %s96, %s97
      %p108 = scmp.eq.s32.totalorder %s20, 0
      %p109 = por %p107, %p108
      %p110 = scmp.ne.s32.totalorder %s96, %s97
      %p111 = scmp.eq.s32.totalorder %s21, 1
      %p112 = por %p110, %p111
      %p114 = scmp.ne.s32.totalorder %s97, %s113
      %p115 = scmp.eq.s32.totalorder %s21, 0
      %p116 = por %p114, %p115
      %s117 = ssub.s32 %s15, %s22
      %p118 = scmp.eq.s32.totalorder %s117, 0
      %s120 = sadd.s32 %s119, 1
      %s121 = scalar_select %p118, %s119, %s120
      %p124 = pneg %p118
      %p125 = scmp.eq.s32.totalorder %s15, 1
      %p126 = por %p124, %p125
      %p127 = scmp.ne.s32.totalorder %s119, %s122
      %p128 = scmp.eq.s32.totalorder %s15, 0
      %p129 = por %p127, %p128
      %p130 = scmp.ne.s32.totalorder %s119, %s122
      %p131 = scmp.eq.s32.totalorder %s20, 1
      %p132 = por %p130, %p131
      %p133 = scmp.ne.s32.totalorder %s122, %s123
      %p134 = scmp.eq.s32.totalorder %s20, 0
      %p135 = por %p133, %p134
      %p136 = scmp.ne.s32.totalorder %s122, %s123
      %p137 = scmp.eq.s32.totalorder %s21, 1
      %p138 = por %p136, %p137
      %p140 = scmp.ne.s32.totalorder %s123, %s139
      %p141 = scmp.eq.s32.totalorder %s21, 0
      %p142 = por %p140, %p141
      %p143 = scmp.le.s32.totalorder 1, %s15
      %p144 = scmp.lt.s32.totalorder %s15, 3
      %p145 = pnand %p143, %p144
      %p146 = pneg %p145
      // Predicated region
      $region9: #{tpu_custom_call.1} parent=5 // pred_check
        _
      $region10: #{tpu_custom_call.1} parent=5 // pred_check_branch
        %148 = sbr.rel (%p145) target = $region12
      $region11: #{tpu_custom_call.1} parent=5 // pred_region
        %s149 = ssub.s32 %s15, 1
        // Predicated region
        $region13: #{tpu_custom_call.1} parent=11 // pred_check
          %p150 = pneg %p62
        $region14: #{tpu_custom_call.1} parent=11 // pred_check_branch
          %152 = sbr.rel (%p150) target = $region16
        $region15: #{tpu_custom_call.1} parent=11 // pred_region
          %s154 = ssub.s32 1024, 1024
          %155 = vsyncadd [#allocation3], %s154
          %s156 = sshll.u32 [#allocation2], 4
          %s157 = int_to_ptr.vmem [resolvable:$true] %s156
          %162 = dma.hbm_to_vmem [thread:$0]  %s1, 1024, %s157, [#allocation3], 64, 64, 4
        $region16: #{tpu_custom_call.1} parent=11 // pred_fallthru
          _
        // Predicated region
        $region17: #{tpu_custom_call.1} parent=11 // pred_check
          %p163 = pneg %p83
        $region18: #{tpu_custom_call.1} parent=11 // pred_check_branch
          %165 = sbr.rel (%p163) target = $region20
        $region19: #{tpu_custom_call.1} parent=11 // pred_region
          _
        $region20: #{tpu_custom_call.1} parent=11 // pred_fallthru
          _
      $region12: #{tpu_custom_call.1} parent=5 // pred_fallthru
        _
      %p166 = scmp.lt.s32.totalorder %s15, 2
      // Predicated region
      $region21: #{tpu_custom_call.1} parent=5 // pred_check
        %p167 = pneg %p166
      $region22: #{tpu_custom_call.1} parent=5 // pred_check_branch
        %169 = sbr.rel (%p167) target = $region24
      $region23: #{tpu_custom_call.1} parent=5 // pred_region
        // Predicated region
        $region25: #{tpu_custom_call.1} parent=23 // pred_check
          %p170 = pneg %p35
        $region26: #{tpu_custom_call.1} parent=23 // pred_check_branch
          %172 = sbr.rel (%p170) target = $region28
        $region27: #{tpu_custom_call.1} parent=23 // pred_region
          %s173 = smul.u32 16, %s15
          %p174 = scmp.lt.s32.totalorder %s173, 31
          %s175 = scalar_select %p174, %s173, 31
          %s176 = smul.addr %s175, 4
          %s177 = scalar_lea.vmem %s0, %s176
          %s178 = smul.u32 16, %s15
        $region28: #{tpu_custom_call.1} parent=23 // pred_fallthru
          _
      $region24: #{tpu_custom_call.1} parent=5 // pred_fallthru
        _
      %p179 = scmp.le.s32.totalorder 1, %s15
      %p180 = scmp.lt.s32.totalorder %s15, 3
      %p181 = pnand %p179, %p180
      %p182 = pneg %p181
      // Predicated region
      $region29: #{tpu_custom_call.1} parent=5 // pred_check
        _
      $region30: #{tpu_custom_call.1} parent=5 // pred_check_branch
        %184 = sbr.rel (%p181) target = $region32
      $region31: #{tpu_custom_call.1} parent=5 // pred_region
        %s185 = ssub.s32 %s15, 1
        // Predicated region
        $region33: #{tpu_custom_call.1} parent=31 // pred_check
          %p186 = pneg %p62
        $region34: #{tpu_custom_call.1} parent=31 // pred_check_branch
          %188 = sbr.rel (%p186) target = $region36
        $region35: #{tpu_custom_call.1} parent=31 // pred_region
          %189 = dma.done [#allocation3], 1024
        $region36: #{tpu_custom_call.1} parent=31 // pred_fallthru
          _
        %s190 = smul.u32 16, %s20
        %p191 = scmp.lt.s32.totalorder %s190, 31
        %s192 = scalar_select %p191, %s190, 31
        %s193 = smul.addr %s192, 4
        %s194 = scalar_lea.vmem %s0, %s193
        %p195 = pneg %p41
        %p196 = pneg %p38
        %p197 = pneg %p62
        %p198 = pneg %p59
        %p199 = pneg %p83
        %p200 = pneg %p80
        %p201 = pneg %p109
        %p202 = pneg %p106
        %s203 = sand.u32 %s96, 1
        %s204 = scalar_lea.sflag [#allocation4], %s203
        %s205 = sand.u32 %s96, 1
        %s206 = smul.addr %s205, 64
        %s207 = scalar_lea.vmem [#allocation5], %s206
        %p208 = pneg %p135
        %p209 = pneg %p132
        %s210 = smul.u32 16, %s20
        %p211 = scmp.lt.s32.totalorder %s210, 31
        %s212 = scalar_select %p211, %s210, 31
        %s213 = smul.addr %s212, 8
        %s214 = scalar_lea.vmem %s4, %s213
        %s215 = smul.u32 16, %s20
        %p216 = scmp.lt.s32.totalorder %s215, 31
        %s217 = scalar_select %p216, %s215, 31
        %s218 = smul.addr %s217, 4
        %s219 = scalar_lea.vmem %s0, %s218
        %s220 = smul.u32 16, %s20
        %s221 = smul.u32 16, %s20
        %s222 = smul.u32 16, %s20
        %p223 = scmp.lt.s32.totalorder %s222, 31
        %s224 = scalar_select %p223, %s222, 31
        %s225 = smul.addr %s224, 8
        %s226 = scalar_lea.vmem %s4, %s225
        %s227 = smul.u32 16, %s20
        %v229 = vld [vmem:[%s219] sm:$0xf]
        %v230 = vld [vmem:[%s219 + $0x4] sm:$0xf]
        %v231 = vld [vmem:[%s219 + $0x8] sm:$0xf]
        %v232 = vld [vmem:[%s219 + $0xc] sm:$0xf]
        %v233 = vld [vmem:[%s219 + $0x10] sm:$0xf]
        %v234 = vld [vmem:[%s219 + $0x14] sm:$0xf]
        %v235 = vld [vmem:[%s219 + $0x18] sm:$0xf]
        %v236 = vld [vmem:[%s219 + $0x1c] sm:$0xf]
        %v237 = vld [vmem:[%s219 + $0x20] sm:$0xf]
        %v238 = vld [vmem:[%s219 + $0x24] sm:$0xf]
        %v239 = vld [vmem:[%s219 + $0x28] sm:$0xf]
        %v240 = vld [vmem:[%s219 + $0x2c] sm:$0xf]
        %v241 = vld [vmem:[%s219 + $0x30] sm:$0xf]
        %v242 = vld [vmem:[%s219 + $0x34] sm:$0xf]
        %v243 = vld [vmem:[%s219 + $0x38] sm:$0xf]
        %v244 = vld [vmem:[%s219 + $0x3c] sm:$0xf]
        %v245 = vld [vmem:[#allocation2] sm:$0xf]
        %v246 = vld [vmem:[#allocation2 + $0x4] sm:$0xf]
        %v247 = vld [vmem:[#allocation2 + $0x8] sm:$0xf]
        %v248 = vld [vmem:[#allocation2 + $0xc] sm:$0xf]
        %v249 = vld [vmem:[#allocation2 + $0x10] sm:$0xf]
        %v250 = vld [vmem:[#allocation2 + $0x14] sm:$0xf]
        %v251 = vld [vmem:[#allocation2 + $0x18] sm:$0xf]
        %v252 = vld [vmem:[#allocation2 + $0x1c] sm:$0xf]
        %v253 = vld [vmem:[#allocation2 + $0x20] sm:$0xf]
        %v254 = vld [vmem:[#allocation2 + $0x24] sm:$0xf]
        %v255 = vld [vmem:[#allocation2 + $0x28] sm:$0xf]
        %v256 = vld [vmem:[#allocation2 + $0x2c] sm:$0xf]
        %v257 = vld [vmem:[#allocation2 + $0x30] sm:$0xf]
        %v258 = vld [vmem:[#allocation2 + $0x34] sm:$0xf]
        %v259 = vld [vmem:[#allocation2 + $0x38] sm:$0xf]
        %v260 = vld [vmem:[#allocation2 + $0x3c] sm:$0xf]
        %v277 = vunpack.c.l.b16 %v229
        %v278 = vunpack.c.l.b16 %v230
        %v279 = vunpack.c.l.b16 %v231
        %v280 = vunpack.c.l.b16 %v232
        %v281 = vunpack.c.l.b16 %v233
        %v282 = vunpack.c.l.b16 %v234
        %v283 = vunpack.c.l.b16 %v235
        %v284 = vunpack.c.l.b16 %v236
        %v285 = vunpack.c.l.b16 %v237
        %v286 = vunpack.c.l.b16 %v238
        %v287 = vunpack.c.l.b16 %v239
        %v288 = vunpack.c.l.b16 %v240
        %v289 = vunpack.c.l.b16 %v241
        %v290 = vunpack.c.l.b16 %v242
        %v291 = vunpack.c.l.b16 %v243
        %v292 = vunpack.c.l.b16 %v244
        %v293 = vpack.c.b16 %v278, %v277
        %v294 = vpack.c.b16 %v280, %v279
        %v295 = vpack.c.b16 %v282, %v281
        %v296 = vpack.c.b16 %v284, %v283
        %v297 = vpack.c.b16 %v286, %v285
        %v298 = vpack.c.b16 %v288, %v287
        %v299 = vpack.c.b16 %v290, %v289
        %v300 = vpack.c.b16 %v292, %v291
        %v325 = vunpack.c.l.b16 %v245
        %v326 = vunpack.c.l.b16 %v246
        %v327 = vunpack.c.l.b16 %v247
        %v328 = vunpack.c.l.b16 %v248
        %v329 = vunpack.c.l.b16 %v249
        %v330 = vunpack.c.l.b16 %v250
        %v331 = vunpack.c.l.b16 %v251
        %v332 = vunpack.c.l.b16 %v252
        %v333 = vunpack.c.l.b16 %v253
        %v334 = vunpack.c.l.b16 %v254
        %v335 = vunpack.c.l.b16 %v255
        %v336 = vunpack.c.l.b16 %v256
        %v337 = vunpack.c.l.b16 %v257
        %v338 = vunpack.c.l.b16 %v258
        %v339 = vunpack.c.l.b16 %v259
        %v340 = vunpack.c.l.b16 %v260
        %v341 = vpack.c.b16 %v326, %v325
        %v342 = vpack.c.b16 %v328, %v327
        %v343 = vpack.c.b16 %v330, %v329
        %v344 = vpack.c.b16 %v332, %v331
        %v345 = vpack.c.b16 %v334, %v333
        %v346 = vpack.c.b16 %v336, %v335
        %v347 = vpack.c.b16 %v338, %v337
        %v348 = vpack.c.b16 %v340, %v339
        %357 = vmatprep.subr.bf16.mxu0 0
        %358 = vmatpush1.bf16.msra.mxu0 %v341
        %359 = vmatprep.subr.bf16.mxu0 0
        %360 = vmatpush1.bf16.msra.mxu0 %v342
        %361 = vmatprep.subr.bf16.mxu0 0
        %362 = vmatpush1.bf16.msra.mxu0 %v343
        %363 = vmatprep.subr.bf16.mxu0 0
        %364 = vmatpush1.bf16.msra.mxu0 %v344
        %365 = vmatprep.subr.bf16.mxu0 0
        %366 = vmatpush1.bf16.msra.mxu0 %v345
        %367 = vmatprep.subr.bf16.mxu0 0
        %368 = vmatpush1.bf16.msra.mxu0 %v346
        %369 = vmatprep.subr.bf16.mxu0 0
        %370 = vmatpush1.bf16.msra.mxu0 %v347
        %371 = vmatprep.subr.bf16.mxu0 0
        %372 = vmatpush1.bf16.msra.mxu0 %v348
        %373 = vmatprep.subr.bf16.mxu0 0
        %374 = vmatpush1.bf16.msra.mxu0 0
        %375 = vmatprep.subr.bf16.mxu0 0
        %376 = vmatpush1.bf16.msra.mxu0 0
        %377 = vmatprep.subr.bf16.mxu0 0
        %378 = vmatpush1.bf16.msra.mxu0 0
        %379 = vmatprep.subr.bf16.mxu0 0
        %380 = vmatpush1.bf16.msra.mxu0 0
        %381 = vmatprep.subr.bf16.mxu0 0
        %382 = vmatpush1.bf16.msra.mxu0 0
        %383 = vmatprep.subr.bf16.mxu0 0
        %384 = vmatpush1.bf16.msra.mxu0 0
        %385 = vmatprep.subr.bf16.mxu0 0
        %386 = vmatpush1.bf16.msra.mxu0 0
        %387 = vmatprep.subr.bf16.mxu0 0
        %388 = vmatpush1.bf16.msra.mxu0 0
        %389 = vmatprep.mubr.bf16.mxu0 0
        %390 = vmatmul.mubr.bf16.gmra.mrb[0].mxu0 %v293
        %v391 = vpop.f32.mrb[0].mxu0
        %v392 = vadd.f32 0.0, %v391
        %v393 = vpop.f32.mrb[0].mxu0
        %v394 = vpop.f32.mrb[0].mxu0
        %v395 = vadd.f32 0.0, %v394
        %v396 = vpop.f32.mrb[0].mxu0
        %397 = vmatprep.mubr.bf16.mxu0 0
        %398 = vmatmul.mubr.bf16.gmra.mrb[0].mxu0 %v294
        %v399 = vpop.f32.mrb[0].mxu0
        %v400 = vadd.f32 0.0, %v399
        %v401 = vpop.f32.mrb[0].mxu0
        %v402 = vpop.f32.mrb[0].mxu0
        %v403 = vadd.f32 0.0, %v402
        %v404 = vpop.f32.mrb[0].mxu0
        %405 = vmatprep.mubr.bf16.mxu0 0
        %406 = vmatmul.mubr.bf16.gmra.mrb[0].mxu0 %v295
        %v407 = vpop.f32.mrb[0].mxu0
        %v408 = vadd.f32 0.0, %v407
        %v409 = vpop.f32.mrb[0].mxu0
        %v410 = vpop.f32.mrb[0].mxu0
        %v411 = vadd.f32 0.0, %v410
        %v412 = vpop.f32.mrb[0].mxu0
        %413 = vmatprep.mubr.bf16.mxu0 0
        %414 = vmatmul.mubr.bf16.gmra.mrb[0].mxu0 %v296
        %v415 = vpop.f32.mrb[0].mxu0
        %v416 = vadd.f32 0.0, %v415
        %v417 = vpop.f32.mrb[0].mxu0
        %v418 = vpop.f32.mrb[0].mxu0
        %v419 = vadd.f32 0.0, %v418
        %v420 = vpop.f32.mrb[0].mxu0
        %421 = vmatprep.mubr.bf16.mxu0 0
        %422 = vmatmul.mubr.bf16.gmra.mrb[0].mxu0 %v297
        %v423 = vpop.f32.mrb[0].mxu0
        %v424 = vadd.f32 0.0, %v423
        %v425 = vpop.f32.mrb[0].mxu0
        %v426 = vpop.f32.mrb[0].mxu0
        %v427 = vadd.f32 0.0, %v426
        %v428 = vpop.f32.mrb[0].mxu0
        %429 = vmatprep.mubr.bf16.mxu0 0
        %430 = vmatmul.mubr.bf16.gmra.mrb[0].mxu0 %v298
        %v431 = vpop.f32.mrb[0].mxu0
        %v432 = vadd.f32 0.0, %v431
        %v433 = vpop.f32.mrb[0].mxu0
        %v434 = vpop.f32.mrb[0].mxu0
        %v435 = vadd.f32 0.0, %v434
        %v436 = vpop.f32.mrb[0].mxu0
        %437 = vmatprep.mubr.bf16.mxu0 0
        %438 = vmatmul.mubr.bf16.gmra.mrb[0].mxu0 %v299
        %v439 = vpop.f32.mrb[0].mxu0
        %v440 = vadd.f32 0.0, %v439
        %v441 = vpop.f32.mrb[0].mxu0
        %v442 = vpop.f32.mrb[0].mxu0
        %v443 = vadd.f32 0.0, %v442
        %v444 = vpop.f32.mrb[0].mxu0
        %445 = vmatprep.mubr.bf16.mxu0 0
        %446 = vmatmul.mubr.bf16.gmra.mrb[0].mxu0 %v300
        %v447 = vpop.f32.mrb[0].mxu0
        %v448 = vadd.f32 0.0, %v447
        %v449 = vpop.f32.mrb[0].mxu0
        %v450 = vpop.f32.mrb[0].mxu0
        %v451 = vadd.f32 0.0, %v450
        %v452 = vpop.f32.mrb[0].mxu0
        %453 = vdwg.mxu0
        %v454 = vld [vmem:[%s2] sm:$0xff]
        %v455 = vld [vmem:[%s2 + $0x8] sm:$0xff]
        %v456 = vld [vmem:[%s2 + $0x10] sm:$0xff]
        %v457 = vld [vmem:[%s2 + $0x18] sm:$0xff]
        %v458 = vld [vmem:[%s2 + $0x20] sm:$0xff]
        %v459 = vld [vmem:[%s2 + $0x28] sm:$0xff]
        %v460 = vld [vmem:[%s2 + $0x30] sm:$0xff]
        %v461 = vld [vmem:[%s2 + $0x38] sm:$0xff]
        %v462 = vld [vmem:[%s2 + $0x40] sm:$0xff]
        %v463 = vld [vmem:[%s2 + $0x48] sm:$0xff]
        %v464 = vld [vmem:[%s2 + $0x50] sm:$0xff]
        %v465 = vld [vmem:[%s2 + $0x58] sm:$0xff]
        %v466 = vld [vmem:[%s2 + $0x60] sm:$0xff]
        %v467 = vld [vmem:[%s2 + $0x68] sm:$0xff]
        %v468 = vld [vmem:[%s2 + $0x70] sm:$0xff]
        %v469 = vld [vmem:[%s2 + $0x78] sm:$0xff]
        %470 = vmatprep.subr.mxu0 0.0
        %471 = vmatpush1.msra.mxu0 %v454
        %472 = vmatprep.subr.mxu0 0.0
        %473 = vmatpush1.msra.mxu0 %v455
        %474 = vmatprep.subr.mxu0 0.0
        %475 = vmatpush1.msra.mxu0 %v456
        %476 = vmatprep.subr.mxu0 0.0
        %477 = vmatpush1.msra.mxu0 %v457
        %478 = vmatprep.subr.mxu0 0.0
        %479 = vmatpush1.msra.mxu0 %v458
        %480 = vmatprep.subr.mxu0 0.0
        %481 = vmatpush1.msra.mxu0 %v459
        %482 = vmatprep.subr.mxu0 0.0
        %483 = vmatpush1.msra.mxu0 %v460
        %484 = vmatprep.subr.mxu0 0.0
        %485 = vmatpush1.msra.mxu0 %v461
        %486 = vmatprep.subr.mxu0 0.0
        %487 = vmatpush1.msra.mxu0 %v462
        %488 = vmatprep.subr.mxu0 0.0
        %489 = vmatpush1.msra.mxu0 %v463
        %490 = vmatprep.subr.mxu0 0.0
        %491 = vmatpush1.msra.mxu0 %v464
        %492 = vmatprep.subr.mxu0 0.0
        %493 = vmatpush1.msra.mxu0 %v465
        %494 = vmatprep.subr.mxu0 0.0
        %495 = vmatpush1.msra.mxu0 %v466
        %496 = vmatprep.subr.mxu0 0.0
        %497 = vmatpush1.msra.mxu0 %v467
        %498 = vmatprep.subr.mxu0 0.0
        %499 = vmatpush1.msra.mxu0 %v468
        %500 = vmatprep.subr.mxu0 0.0
        %501 = vmatpush1.msra.mxu0 %v469
        %502 = vmatprep.subr.mxu0 0.0
        %503 = vmatpush1.msra.mxu0 0.0
        %504 = vmatprep.subr.mxu0 0.0
        %505 = vmatpush1.msra.mxu0 0.0
        %506 = vmatprep.subr.mxu0 0.0
        %507 = vmatpush1.msra.mxu0 0.0
        %508 = vmatprep.subr.mxu0 0.0
        %509 = vmatpush1.msra.mxu0 0.0
        %510 = vmatprep.subr.mxu0 0.0
        %511 = vmatpush1.msra.mxu0 0.0
        %512 = vmatprep.subr.mxu0 0.0
        %513 = vmatpush1.msra.mxu0 0.0
        %514 = vmatprep.subr.mxu0 0.0
        %515 = vmatpush1.msra.mxu0 0.0
        %516 = vmatprep.subr.mxu0 0.0
        %517 = vmatpush1.msra.mxu0 0.0
        %518 = vmatprep.subr.mxu0 0.0
        %519 = vmatpush1.msra.mxu0 0.0
        %520 = vmatprep.subr.mxu0 0.0
        %521 = vmatpush1.msra.mxu0 0.0
        %522 = vmatprep.subr.mxu0 0.0
        %523 = vmatpush1.msra.mxu0 0.0
        %524 = vmatprep.subr.mxu0 0.0
        %525 = vmatpush1.msra.mxu0 0.0
        %526 = vmatprep.subr.mxu0 0.0
        %527 = vmatpush1.msra.mxu0 0.0
        %528 = vmatprep.subr.mxu0 0.0
        %529 = vmatpush1.msra.mxu0 0.0
        %530 = vmatprep.subr.mxu0 0.0
        %531 = vmatpush1.msra.mxu0 0.0
        %532 = vmatprep.subr.mxu0 0.0
        %533 = vmatpush1.msra.mxu0 0.0
        %534 = vmatprep.mubr.f32.mxu0 0.0
        %535 = vmatmul.mubr.f32.gmra.mrb[0].mxu0 %v392
        %v536 = vpop.f32.mrb[0].mxu0
        %v537 = vadd.f32 0.0, %v536
        %v538 = vpop.f32.mrb[0].mxu0
        %539 = vmatprep.mubr.f32.mxu0 0.0
        %540 = vmatmul.mubr.f32.gmra.mrb[0].mxu0 %v395
        %v541 = vpop.f32.mrb[0].mxu0
        %v542 = vadd.f32 0.0, %v541
        %v543 = vpop.f32.mrb[0].mxu0
        %544 = vmatprep.mubr.f32.mxu0 0.0
        %545 = vmatmul.mubr.f32.gmra.mrb[0].mxu0 %v400
        %v546 = vpop.f32.mrb[0].mxu0
        %v547 = vadd.f32 0.0, %v546
        %v548 = vpop.f32.mrb[0].mxu0
        %549 = vmatprep.mubr.f32.mxu0 0.0
        %550 = vmatmul.mubr.f32.gmra.mrb[0].mxu0 %v403
        %v551 = vpop.f32.mrb[0].mxu0
        %v552 = vadd.f32 0.0, %v551
        %v553 = vpop.f32.mrb[0].mxu0
        %554 = vmatprep.mubr.f32.mxu0 0.0
        %555 = vmatmul.mubr.f32.gmra.mrb[0].mxu0 %v408
        %v556 = vpop.f32.mrb[0].mxu0
        %v557 = vadd.f32 0.0, %v556
        %v558 = vpop.f32.mrb[0].mxu0
        %559 = vmatprep.mubr.f32.mxu0 0.0
        %560 = vmatmul.mubr.f32.gmra.mrb[0].mxu0 %v411
        %v561 = vpop.f32.mrb[0].mxu0
        %v562 = vadd.f32 0.0, %v561
        %v563 = vpop.f32.mrb[0].mxu0
        %564 = vmatprep.mubr.f32.mxu0 0.0
        %565 = vmatmul.mubr.f32.gmra.mrb[0].mxu0 %v416
        %v566 = vpop.f32.mrb[0].mxu0
        %v567 = vadd.f32 0.0, %v566
        %v568 = vpop.f32.mrb[0].mxu0
        %569 = vmatprep.mubr.f32.mxu0 0.0
        %570 = vmatmul.mubr.f32.gmra.mrb[0].mxu0 %v419
        %v571 = vpop.f32.mrb[0].mxu0
        %v572 = vadd.f32 0.0, %v571
        %v573 = vpop.f32.mrb[0].mxu0
        %574 = vmatprep.mubr.f32.mxu0 0.0
        %575 = vmatmul.mubr.f32.gmra.mrb[0].mxu0 %v424
        %v576 = vpop.f32.mrb[0].mxu0
        %v577 = vadd.f32 0.0, %v576
        %v578 = vpop.f32.mrb[0].mxu0
        %579 = vmatprep.mubr.f32.mxu0 0.0
        %580 = vmatmul.mubr.f32.gmra.mrb[0].mxu0 %v427
        %v581 = vpop.f32.mrb[0].mxu0
        %v582 = vadd.f32 0.0, %v581
        %v583 = vpop.f32.mrb[0].mxu0
        %584 = vmatprep.mubr.f32.mxu0 0.0
        %585 = vmatmul.mubr.f32.gmra.mrb[0].mxu0 %v432
        %v586 = vpop.f32.mrb[0].mxu0
        %v587 = vadd.f32 0.0, %v586
        %v588 = vpop.f32.mrb[0].mxu0
        %589 = vmatprep.mubr.f32.mxu0 0.0
        %590 = vmatmul.mubr.f32.gmra.mrb[0].mxu0 %v435
        %v591 = vpop.f32.mrb[0].mxu0
        %v592 = vadd.f32 0.0, %v591
        %v593 = vpop.f32.mrb[0].mxu0
        %594 = vmatprep.mubr.f32.mxu0 0.0
        %595 = vmatmul.mubr.f32.gmra.mrb[0].mxu0 %v440
        %v596 = vpop.f32.mrb[0].mxu0
        %v597 = vadd.f32 0.0, %v596
        %v598 = vpop.f32.mrb[0].mxu0
        %599 = vmatprep.mubr.f32.mxu0 0.0
        %600 = vmatmul.mubr.f32.gmra.mrb[0].mxu0 %v443
        %v601 = vpop.f32.mrb[0].mxu0
        %v602 = vadd.f32 0.0, %v601
        %v603 = vpop.f32.mrb[0].mxu0
        %604 = vmatprep.mubr.f32.mxu0 0.0
        %605 = vmatmul.mubr.f32.gmra.mrb[0].mxu0 %v448
        %v606 = vpop.f32.mrb[0].mxu0
        %v607 = vadd.f32 0.0, %v606
        %v608 = vpop.f32.mrb[0].mxu0
        %609 = vmatprep.mubr.f32.mxu0 0.0
        %610 = vmatmul.mubr.f32.gmra.mrb[0].mxu0 %v451
        %v611 = vpop.f32.mrb[0].mxu0
        %v612 = vadd.f32 0.0, %v611
        %v613 = vpop.f32.mrb[0].mxu0
        %614 = vdwg.mxu0
        %vm615 = vcmask 15360
        %616 = vst.msk [vmem:[%s226] sm:$0xff] %vm615, %v537
        %617 = vst.msk [vmem:[%s226 + $0x8] sm:$0xff] %vm615, %v542
        %618 = vst.msk [vmem:[%s226 + $0x10] sm:$0xff] %vm615, %v547
        %619 = vst.msk [vmem:[%s226 + $0x18] sm:$0xff] %vm615, %v552
        %620 = vst.msk [vmem:[%s226 + $0x20] sm:$0xff] %vm615, %v557
        %621 = vst.msk [vmem:[%s226 + $0x28] sm:$0xff] %vm615, %v562
        %622 = vst.msk [vmem:[%s226 + $0x30] sm:$0xff] %vm615, %v567
        %623 = vst.msk [vmem:[%s226 + $0x38] sm:$0xff] %vm615, %v572
        %624 = vst.msk [vmem:[%s226 + $0x40] sm:$0xff] %vm615, %v577
        %625 = vst.msk [vmem:[%s226 + $0x48] sm:$0xff] %vm615, %v582
        %626 = vst.msk [vmem:[%s226 + $0x50] sm:$0xff] %vm615, %v587
        %627 = vst.msk [vmem:[%s226 + $0x58] sm:$0xff] %vm615, %v592
        %628 = vst.msk [vmem:[%s226 + $0x60] sm:$0xff] %vm615, %v597
        %629 = vst.msk [vmem:[%s226 + $0x68] sm:$0xff] %vm615, %v602
        %630 = vst.msk [vmem:[%s226 + $0x70] sm:$0xff] %vm615, %v607
        %631 = vst.msk [vmem:[%s226 + $0x78] sm:$0xff] %vm615, %v612
        %v632 = vpack.c.bf16 %v395, %v392
        %v633 = vpack.c.bf16 %v403, %v400
        %v634 = vpack.c.bf16 %v411, %v408
        %v635 = vpack.c.bf16 %v419, %v416
        %v636 = vpack.c.bf16 %v427, %v424
        %v637 = vpack.c.bf16 %v435, %v432
        %v638 = vpack.c.bf16 %v443, %v440
        %v639 = vpack.c.bf16 %v451, %v448
        %v648 = vunpack.c.l.b16 %v632
        %v649 = vunpack.c.h.b16 %v632
        %v650 = vunpack.c.l.b16 %v633
        %v651 = vunpack.c.h.b16 %v633
        %v652 = vunpack.c.l.b16 %v634
        %v653 = vunpack.c.h.b16 %v634
        %v654 = vunpack.c.l.b16 %v635
        %v655 = vunpack.c.h.b16 %v635
        %v656 = vunpack.c.l.b16 %v636
        %v657 = vunpack.c.h.b16 %v636
        %v658 = vunpack.c.l.b16 %v637
        %v659 = vunpack.c.h.b16 %v637
        %v660 = vunpack.c.l.b16 %v638
        %v661 = vunpack.c.h.b16 %v638
        %v662 = vunpack.c.l.b16 %v639
        %v663 = vunpack.c.h.b16 %v639
        %v664 = vpack.c.b16 %v648, %v648
        %v665 = vpack.c.b16 %v649, %v649
        %v666 = vpack.c.b16 %v650, %v650
        %v667 = vpack.c.b16 %v651, %v651
        %v668 = vpack.c.b16 %v652, %v652
        %v669 = vpack.c.b16 %v653, %v653
        %v670 = vpack.c.b16 %v654, %v654
        %v671 = vpack.c.b16 %v655, %v655
        %v672 = vpack.c.b16 %v656, %v656
        %v673 = vpack.c.b16 %v657, %v657
        %v674 = vpack.c.b16 %v658, %v658
        %v675 = vpack.c.b16 %v659, %v659
        %v676 = vpack.c.b16 %v660, %v660
        %v677 = vpack.c.b16 %v661, %v661
        %v678 = vpack.c.b16 %v662, %v662
        %v679 = vpack.c.b16 %v663, %v663
        %696 = vst [vmem:[%s207] sm:$0xf] %v664
        %697 = vst [vmem:[%s207 + $0x4] sm:$0xf] %v665
        %698 = vst [vmem:[%s207 + $0x8] sm:$0xf] %v666
        %699 = vst [vmem:[%s207 + $0xc] sm:$0xf] %v667
        %700 = vst [vmem:[%s207 + $0x10] sm:$0xf] %v668
        %701 = vst [vmem:[%s207 + $0x14] sm:$0xf] %v669
        %702 = vst [vmem:[%s207 + $0x18] sm:$0xf] %v670
        %703 = vst [vmem:[%s207 + $0x1c] sm:$0xf] %v671
        %704 = vst [vmem:[%s207 + $0x20] sm:$0xf] %v672
        %705 = vst [vmem:[%s207 + $0x24] sm:$0xf] %v673
        %706 = vst [vmem:[%s207 + $0x28] sm:$0xf] %v674
        %707 = vst [vmem:[%s207 + $0x2c] sm:$0xf] %v675
        %708 = vst [vmem:[%s207 + $0x30] sm:$0xf] %v676
        %709 = vst [vmem:[%s207 + $0x34] sm:$0xf] %v677
        %710 = vst [vmem:[%s207 + $0x38] sm:$0xf] %v678
        %711 = vst [vmem:[%s207 + $0x3c] sm:$0xf] %v679
        %s712 = sand.u32 %s96, 1
        %s713 = scalar_lea.sflag [#allocation4], %s712
        %s714 = sand.u32 %s96, 1
        %s715 = smul.addr %s714, 64
        %s716 = scalar_lea.vmem [#allocation5], %s715
        %s717 = smul.u32 16, %s20
        %p718 = scmp.lt.s32.totalorder %s717, 31
        %s719 = scalar_select %p718, %s717, 31
        %s720 = smul.addr %s719, 8
        %s721 = scalar_lea.vmem %s4, %s720
        // Predicated region
        $region37: #{tpu_custom_call.1} parent=31 // pred_check
          %p722 = pneg %p106
        $region38: #{tpu_custom_call.1} parent=31 // pred_check_branch
          %724 = sbr.rel (%p722) target = $region40
        $region39: #{tpu_custom_call.1} parent=31 // pred_region
          %s725 = smul.u32 16, %s20
          %s727 = ssub.s32 1024, 1024
          %728 = vsyncadd %s713, %s727
          %s729 = smul.addr %s725, 64
          %s730 = scalar_lea.hbm %s3, %s729
          %s731 = sshll.u32 %s716, 4
          %s732 = int_to_ptr.vmem [resolvable:$true] %s731
          %737 = dma.vmem_to_hbm [thread:$0]  %s732, 1024, %s730, %s713, 64, 64, 4
        $region40: #{tpu_custom_call.1} parent=31 // pred_fallthru
          _
        // Predicated region
        $region41: #{tpu_custom_call.1} parent=31 // pred_check
          %p738 = pneg %p132
        $region42: #{tpu_custom_call.1} parent=31 // pred_check_branch
          %740 = sbr.rel (%p738) target = $region44
        $region43: #{tpu_custom_call.1} parent=31 // pred_region
          %s741 = smul.u32 16, %s20
        $region44: #{tpu_custom_call.1} parent=31 // pred_fallthru
          _
      $region32: #{tpu_custom_call.1} parent=5 // pred_fallthru
        _
      %p742 = scmp.le.s32.totalorder 2, %s15
      // Predicated region
      $region45: #{tpu_custom_call.1} parent=5 // pred_check
        %p743 = pneg %p742
      $region46: #{tpu_custom_call.1} parent=5 // pred_check_branch
        %745 = sbr.rel (%p743) target = $region48
      $region47: #{tpu_custom_call.1} parent=5 // pred_region
        %s746 = ssub.s32 %s15, 2
        // Predicated region
        $region49: #{tpu_custom_call.1} parent=47 // pred_check
          %p747 = pneg %p112
        $region50: #{tpu_custom_call.1} parent=47 // pred_check_branch
          %749 = sbr.rel (%p747) target = $region52
        $region51: #{tpu_custom_call.1} parent=47 // pred_region
          %s750 = sand.u32 %s97, 1
          %s751 = scalar_lea.sflag [#allocation4], %s750
          %s752 = sand.u32 %s97, 1
          %s753 = smul.addr %s752, 64
          %s754 = scalar_lea.vmem [#allocation5], %s753
          %755 = dma.done %s751, 1024
        $region52: #{tpu_custom_call.1} parent=47 // pred_fallthru
          _
        // Predicated region
        $region53: #{tpu_custom_call.1} parent=47 // pred_check
          %p756 = pneg %p138
        $region54: #{tpu_custom_call.1} parent=47 // pred_check_branch
          %758 = sbr.rel (%p756) target = $region56
        $region55: #{tpu_custom_call.1} parent=47 // pred_region
          %s759 = smul.u32 16, %s21
          %p760 = scmp.lt.s32.totalorder %s759, 31
          %s761 = scalar_select %p760, %s759, 31
          %s762 = smul.addr %s761, 8
          %s763 = scalar_lea.vmem %s4, %s762
        $region56: #{tpu_custom_call.1} parent=47 // pred_fallthru
          _
      $region48: #{tpu_custom_call.1} parent=5 // pred_fallthru
        _
    $region6: #{tpu_custom_call.1} parent=1 // loop_footer
      %s19 = sadd.s32 1, %s15
    $region7: #{tpu_custom_call.1} parent=1 // loop_footer_branch
      %14 = sbr.rel target = $region3
    $region8: #{tpu_custom_call.1} parent=1 // loop_exit
      _
    %764 = vsyncpa [#allocation3], 1
    %s765 = scalar_lea.sflag [#allocation3], 1
    %766 = vsyncpa %s765, 1
    %767 = vsyncpa [#allocation4], 1
    %s768 = scalar_lea.sflag [#allocation4], 1
    %769 = vsyncpa %s768, 1

</llo_original>
